<compile_context>
chip_gen: v7x
topology: tpu7x:2x2x1
jax: 0.10.0
libtpu: 0.0.40
codegen_flags: <defaults>
</compile_context>

<pallas_src>
import functools

import jax
import jax.numpy as jnp
from jax.experimental import pallas as pl
from jax.experimental.pallas import tpu as pltpu

INPUT_DIM = 1024
HIDDEN_DIM = 128
OUTPUT_DIM = 2


def _round_up(v, m):
    return ((v + m - 1) // m) * m


def _mlp_kernel(x_ref, w1_ref, b1_ref, w2_ref, b2_ref, o_ref):
    # Linear 1: bf16 x bf16 -> f32 accumulate on the MXU, then bias + ReLU.
    h = jnp.dot(x_ref[...], w1_ref[...], preferred_element_type=jnp.float32)
    h = jnp.maximum(h + b1_ref[...], 0.0)                       # (TB, H) + (1, H)
    # Linear 2: cast hidden back to bf16 (matches default MXU operand precision anyway).
    out = jnp.dot(h.astype(jnp.bfloat16), w2_ref[...],
                  preferred_element_type=jnp.float32)
    o_ref[...] = (out + b2_ref[...]).astype(o_ref.dtype)        # (TB, O) + (1, O)


@functools.partial(jax.jit, static_argnames=("tb",))
def small_classifier_forward(x, w1, b1, w2, b2, *, tb=2048):
    """x: (B, INPUT_DIM). Returns (B, OUTPUT_DIM) float32."""
    B = x.shape[0]

    # Stream activations / weights as bf16 (halves the dominant HBM stream);
    # biases stay f32 (tiny) so the epilogue add is f32.
    xb = x.astype(jnp.bfloat16)
    w1b = w1.astype(jnp.bfloat16)
    w2b = w2.astype(jnp.bfloat16)
    b1f = b1.astype(jnp.float32).reshape(1, HIDDEN_DIM)
    b2f = b2.astype(jnp.float32).reshape(1, OUTPUT_DIM)

    # Tiny batches only: pad to one full 16-row (bf16-packed) tile. No pad otherwise —
    # ragged batches are handled by Pallas' partial trailing block.
    if B < 16:
        xb = jnp.pad(xb, ((0, 16 - B), (0, 0)))
    b_work = xb.shape[0]

    # Batch tile: multiple of 16 (bf16 sublane packing), no larger than the batch,
    # and capped so there are >= 2 grid tiles when possible (v7x megacore sharding).
    tb = max(16, _round_up(min(int(tb), _round_up(b_work, 16)), 16))
    if b_work > 16:
        tb = min(tb, _round_up(pl.cdiv(b_work, 2), 16))
    n_tiles = pl.cdiv(b_work, tb)

    cost = pl.CostEstimate(
        flops=2 * b_work * (INPUT_DIM * HIDDEN_DIM + HIDDEN_DIM * OUTPUT_DIM),
        transcendentals=0,
        bytes_accessed=(b_work * INPUT_DIM * 2            # x   (bf16)
                        + INPUT_DIM * HIDDEN_DIM * 2      # w1  (bf16)
                        + HIDDEN_DIM * OUTPUT_DIM * 2     # w2  (bf16)
                        + (HIDDEN_DIM + OUTPUT_DIM) * 4   # biases (f32)
                        + b_work * OUTPUT_DIM * 4),       # out (f32)
    )

    out = pl.pallas_call(
        _mlp_kernel,
        out_shape=jax.ShapeDtypeStruct((b_work, OUTPUT_DIM), jnp.float32),
        grid_spec=pltpu.PrefetchScalarGridSpec(
            num_scalar_prefetch=0,
            grid=(n_tiles,),
            in_specs=[
                pl.BlockSpec((tb, INPUT_DIM), lambda i: (i, 0)),           # x: streamed
                pl.BlockSpec((INPUT_DIM, HIDDEN_DIM), lambda i: (0, 0)),   # w1: resident
                pl.BlockSpec((1, HIDDEN_DIM), lambda i: (0, 0)),           # b1: resident
                pl.BlockSpec((HIDDEN_DIM, OUTPUT_DIM), lambda i: (0, 0)),  # w2: resident
                pl.BlockSpec((1, OUTPUT_DIM), lambda i: (0, 0)),           # b2: resident
            ],
            out_specs=pl.BlockSpec((tb, OUTPUT_DIM), lambda i: (i, 0)),
        ),
        compiler_params=pltpu.CompilerParams(
            dimension_semantics=("parallel",),
        ),
        cost_estimate=cost,
    )(xb, w1b, b1f, w2b, b2f)

    return out[:B]


def init_params(key):
    """Deterministic init matching PyTorch nn.Linear default:
    U(-1/sqrt(fan_in), 1/sqrt(fan_in)) for both weights and biases."""
    k1, k2, k3, k4 = jax.random.split(key, 4)
    bound1 = 1.0 / jnp.sqrt(jnp.float32(INPUT_DIM))
    bound2 = 1.0 / jnp.sqrt(jnp.float32(HIDDEN_DIM))
    w1 = jax.random.uniform(k1, (INPUT_DIM, HIDDEN_DIM), jnp.float32, -bound1, bound1)
    b1 = jax.random.uniform(k2, (1, HIDDEN_DIM), jnp.float32, -bound1, bound1)
    w2 = jax.random.uniform(k3, (HIDDEN_DIM, OUTPUT_DIM), jnp.float32, -bound2, bound2)
    b2 = jax.random.uniform(k4, (1, OUTPUT_DIM), jnp.float32, -bound2, bound2)
    return w1, b1, w2, b2


if __name__ == "__main__":
    key = jax.random.PRNGKey(0)
    kx, kp = jax.random.split(key)
    w1, b1, w2, b2 = init_params(kp)

    # Small ragged batch (not a multiple of 16) -> exercises >=2 grid tiles and the
    # partial trailing block (no pre-kernel pad).
    B = 24
    x = jax.random.normal(kx, (B, INPUT_DIM), jnp.float32)

    out = jax.block_until_ready(small_classifier_forward(x, w1, b1, w2, b2))
    assert out.shape == (B, OUTPUT_DIM)
    assert out.dtype == jnp.float32

    # Tight check vs. a plain-JAX reference using the same bf16 operands / f32 accumulation.
    xb = x.astype(jnp.bfloat16)
    w1b = w1.astype(jnp.bfloat16)
    w2b = w2.astype(jnp.bfloat16)
    h_ref = jnp.maximum(
        jnp.dot(xb, w1b, preferred_element_type=jnp.float32) + b1, 0.0)
    ref = jnp.dot(h_ref.astype(jnp.bfloat16), w2b,
                  preferred_element_type=jnp.float32) + b2
    assert jnp.allclose(out, ref, atol=1e-3, rtol=1e-3), \
        float(jnp.max(jnp.abs(out - ref)))

    # Loose semantic check vs. full-f32 math (bf16 streaming introduces small error).
    ref_f32 = jnp.maximum(x @ w1 + b1, 0.0) @ w2 + b2
    assert jnp.allclose(out, ref_f32, atol=5e-2, rtol=5e-2)

    print("KERNEL_OK")
</pallas_src>

<mosaic_0001>
module attributes {stable_mosaic.version = 11 : i64} {
  func.func @_mlp_kernel(%arg0: i32, %arg1: memref<16x1024xbf16, #tpu.memory_space<vmem>>, %arg2: memref<1024x128xbf16, #tpu.memory_space<vmem>>, %arg3: memref<1x128xf32, #tpu.memory_space<vmem>>, %arg4: memref<128x2xbf16, #tpu.memory_space<vmem>>, %arg5: memref<1x2xf32, #tpu.memory_space<vmem>>, %arg6: memref<16x2xf32, #tpu.memory_space<vmem>>) attributes {dimension_semantics = [#tpu.dimension_semantics<parallel>], iteration_bounds = array<i64: 2>, scalar_prefetch = 0 : i64, scratch_operands = 0 : i64, tpu.core_type = #tpu.core_type<tc>, window_params = [{transform_indices = @transform_0, window_bounds = array<i64: 16, 1024>}, {pipeline_mode = #tpu.pipeline_mode<synchronous>, transform_indices = @transform_1, window_bounds = array<i64: 1024, 128>}, {pipeline_mode = #tpu.pipeline_mode<synchronous>, transform_indices = @transform_2, window_bounds = array<i64: 1, 128>}, {pipeline_mode = #tpu.pipeline_mode<synchronous>, transform_indices = @transform_3, window_bounds = array<i64: 128, 2>}, {pipeline_mode = #tpu.pipeline_mode<synchronous>, transform_indices = @transform_4, window_bounds = array<i64: 1, 2>}, {transform_indices = @transform_5, window_bounds = array<i64: 16, 2>}]} {
    %c0 = arith.constant 0 : index
    %c0_0 = arith.constant 0 : index
    %0 = vector.load %arg1[%c0, %c0_0] : memref<16x1024xbf16, #tpu.memory_space<vmem>>, vector<16x1024xbf16>
    %c0_1 = arith.constant 0 : index
    %c0_2 = arith.constant 0 : index
    %1 = vector.load %arg2[%c0_1, %c0_2] : memref<1024x128xbf16, #tpu.memory_space<vmem>>, vector<1024x128xbf16>
    %cst = arith.constant dense<0.000000e+00> : vector<16x128xf32>
    %2 = tpu.matmul %0, %1, %cst {dimension_numbers = #tpu.dot_dimension_numbers<[1], [0], [0], [1], [0, 0, 1, 1], [], []>} : vector<16x1024xbf16>, vector<1024x128xbf16>, vector<16x128xf32> -> vector<16x128xf32>
    %c0_3 = arith.constant 0 : index
    %c0_4 = arith.constant 0 : index
    %3 = vector.load %arg3[%c0_3, %c0_4] : memref<1x128xf32, #tpu.memory_space<vmem>>, vector<1x128xf32>
    %4 = vector.broadcast %3 : vector<1x128xf32> to vector<16x128xf32>
    %5 = arith.addf %2, %4 : vector<16x128xf32>
    %cst_5 = arith.constant 0.000000e+00 : f32
    %6 = vector.broadcast %cst_5 : f32 to vector<16x128xf32>
    %7 = arith.maximumf %5, %6 : vector<16x128xf32>
    %8 = arith.truncf %7 : vector<16x128xf32> to vector<16x128xbf16>
    %c0_6 = arith.constant 0 : index
    %c0_7 = arith.constant 0 : index
    %9 = vector.load %arg4[%c0_6, %c0_7] : memref<128x2xbf16, #tpu.memory_space<vmem>>, vector<128x2xbf16>
    %cst_8 = arith.constant dense<0.000000e+00> : vector<16x2xf32>
    %10 = tpu.matmul %8, %9, %cst_8 {dimension_numbers = #tpu.dot_dimension_numbers<[1], [0], [0], [1], [0, 0, 1, 1], [], []>} : vector<16x128xbf16>, vector<128x2xbf16>, vector<16x2xf32> -> vector<16x2xf32>
    %c0_9 = arith.constant 0 : index
    %c0_10 = arith.constant 0 : index
    %11 = vector.load %arg5[%c0_9, %c0_10] : memref<1x2xf32, #tpu.memory_space<vmem>>, vector<1x2xf32>
    %12 = vector.broadcast %11 : vector<1x2xf32> to vector<16x2xf32>
    %13 = arith.addf %10, %12 : vector<16x2xf32>
    %c0_11 = arith.constant 0 : index
    %c0_12 = arith.constant 0 : index
    %14 = vector.load %arg6[%c0_11, %c0_12] : memref<16x2xf32, #tpu.memory_space<vmem>>, vector<16x2xf32>
    tpu.vector_store %arg6[%c0_11, %c0_12], %13 {strides = array<i32>} : memref<16x2xf32, #tpu.memory_space<vmem>>, vector<16x2xf32>,
    return
  }
  func.func @transform_0(%arg0: i32) -> (i32, i32) {
    %c0_i32 = arith.constant 0 : i32
    %c0_i32_0 = arith.constant 0 : i32
    return %arg0, %c0_i32 : i32, i32
  }
  func.func @transform_1(%arg0: i32) -> (i32, i32) {
    %c0_i32 = arith.constant 0 : i32
    %c0_i32_0 = arith.constant 0 : i32
    %c0_i32_1 = arith.constant 0 : i32
    return %c0_i32, %c0_i32_0 : i32, i32
  }
  func.func @transform_2(%arg0: i32) -> (i32, i32) {
    %c0_i32 = arith.constant 0 : i32
    %c0_i32_0 = arith.constant 0 : i32
    %c0_i32_1 = arith.constant 0 : i32
    return %c0_i32, %c0_i32_0 : i32, i32
  }
  func.func @transform_3(%arg0: i32) -> (i32, i32) {
    %c0_i32 = arith.constant 0 : i32
    %c0_i32_0 = arith.constant 0 : i32
    %c0_i32_1 = arith.constant 0 : i32
    return %c0_i32, %c0_i32_0 : i32, i32
  }
  func.func @transform_4(%arg0: i32) -> (i32, i32) {
    %c0_i32 = arith.constant 0 : i32
    %c0_i32_0 = arith.constant 0 : i32
    %c0_i32_1 = arith.constant 0 : i32
    return %c0_i32, %c0_i32_0 : i32, i32
  }
  func.func @transform_5(%arg0: i32) -> (i32, i32) {
    %c0_i32 = arith.constant 0 : i32
    %c0_i32_0 = arith.constant 0 : i32
    return %arg0, %c0_i32 : i32, i32
  }
}

</mosaic_0001>

<llo_original>
// kernel: small_classifier_forward.1
$region0: #{small_classifier_forward.1}
  #allocation0 [shape = 'u32[]', space=smem, size = 0x4, offset = 0x4, fixed_abs, tag = 'smem constant byte address 0x4 - core index']
  #allocation1 [shape = 'u32[144,128]{1,0:T(1,128)}', space=vmem, size = 0x12000, scoped, tag = 'internal scratch']
  %s0 = inlined_call_operand.vmem [shape: bf16[24,1024], index: 0, kind: input, shape index: {}]
  %s1 = inlined_call_operand.vmem [shape: bf16[1024,128], index: 1, kind: input, shape index: {}]
  %s2 = inlined_call_operand.vmem [shape: f32[1,128], index: 2, kind: input, shape index: {}]
  %s3 = inlined_call_operand.vmem [shape: bf16[128,2], index: 3, kind: input, shape index: {}]
  %s4 = inlined_call_operand.vmem [shape: f32[1,2], index: 4, kind: input, shape index: {}]
  %s5 = inlined_call_operand.vmem [shape: f32[24,2], index: 5, kind: output, shape index: {}]
  %s6 = sld [smem:[#allocation0]]
  $region101: #{small_classifier_forward.1} parent=0
    _
  %s8 = ssub.s32 1, %s6
  %s9 = scalar_select 0, %s8, %s6
  $region1: #{small_classifier_forward.1} parent=0
    #allocation2 [shape = 'u8[16384]{0}', space=vmem, size = 0x4000, scoped, tag = 'output window, operand 0']
    loop: start=0, step=1, limit=4
    $region2: #{small_classifier_forward.1} parent=1 // loop_pre_header
      _
    $region3: #{small_classifier_forward.1} parent=1 // loop_header
      %s11 = sphi 0, %s15
      %p12 = scmp.ge.s32.totalorder %s11, 4
      %s21 = sphi 0, %s23
      %s24 = sphi 0, %s21
      %s25 = sphi 0, %s24
      %s41 = sphi 0, %s25
      %s45 = sphi 0, %s45
      %s47 = sphi 0, %s45
      %s48 = sphi 0, %s47
      %s62 = sphi 0, %s48
      %s66 = sphi 0, %s66
      %s68 = sphi 0, %s66
      %s69 = sphi 0, %s68
      %s83 = sphi 0, %s69
      %s87 = sphi 0, %s87
      %s89 = sphi 0, %s87
      %s90 = sphi 0, %s89
      %s104 = sphi 0, %s90
      %s108 = sphi 0, %s108
      %s110 = sphi 0, %s108
      %s111 = sphi 0, %s110
      %s125 = sphi 0, %s111
      %s131 = sphi 0, %s133
      %s134 = sphi 0, %s131
      %s135 = sphi 0, %s134
      %s151 = sphi 0, %s135
    $region4: #{small_classifier_forward.1} parent=1 // loop_header_branch
      %14 = sbr.rel (%p12) target = $region8
    $region5: #{small_classifier_forward.1} parent=1 // loop_body
      %s16 = ssub.s32 %s11, 1
      %s17 = ssub.s32 %s11, 2
      %s18 = sadd.s32 %s11, 1
      %s19 = ssub.s32 %s11, %s18
      %p20 = scmp.eq.s32.totalorder %s19, 0
      %s22 = sadd.s32 %s21, 1
      %s23 = scalar_select %p20, %s21, %s22
      %p26 = pneg %p20
      %p27 = scmp.eq.s32.totalorder %s11, 1
      %p28 = por %p26, %p27
      %p29 = scmp.ne.s32.totalorder %s21, %s24
      %p30 = scmp.eq.s32.totalorder %s11, 0
      %p31 = por %p29, %p30
      %p32 = scmp.ne.s32.totalorder %s21, %s24
      %p33 = scmp.eq.s32.totalorder %s16, 1
      %p34 = por %p32, %p33
      %p35 = scmp.ne.s32.totalorder %s24, %s25
      %p36 = scmp.eq.s32.totalorder %s16, 0
      %p37 = por %p35, %p36
      %p38 = scmp.ne.s32.totalorder %s24, %s25
      %p39 = scmp.eq.s32.totalorder %s17, 1
      %p40 = por %p38, %p39
      %p42 = scmp.ne.s32.totalorder %s25, %s41
      %p43 = scmp.eq.s32.totalorder %s17, 0
      %p44 = por %p42, %p43
      %s46 = sadd.s32 %s45, 1
      %p49 = scmp.eq.s32.totalorder %s11, 1
      %p50 = scmp.ne.s32.totalorder %s45, %s47
      %p51 = scmp.eq.s32.totalorder %s11, 0
      %p52 = por %p50, %p51
      %p53 = scmp.ne.s32.totalorder %s45, %s47
      %p54 = scmp.eq.s32.totalorder %s16, 1
      %p55 = por %p53, %p54
      %p56 = scmp.ne.s32.totalorder %s47, %s48
      %p57 = scmp.eq.s32.totalorder %s16, 0
      %p58 = por %p56, %p57
      %p59 = scmp.ne.s32.totalorder %s47, %s48
      %p60 = scmp.eq.s32.totalorder %s17, 1
      %p61 = por %p59, %p60
      %p63 = scmp.ne.s32.totalorder %s48, %s62
      %p64 = scmp.eq.s32.totalorder %s17, 0
      %p65 = por %p63, %p64
      %s67 = sadd.s32 %s66, 1
      %p70 = scmp.eq.s32.totalorder %s11, 1
      %p71 = scmp.ne.s32.totalorder %s66, %s68
      %p72 = scmp.eq.s32.totalorder %s11, 0
      %p73 = por %p71, %p72
      %p74 = scmp.ne.s32.totalorder %s66, %s68
      %p75 = scmp.eq.s32.totalorder %s16, 1
      %p76 = por %p74, %p75
      %p77 = scmp.ne.s32.totalorder %s68, %s69
      %p78 = scmp.eq.s32.totalorder %s16, 0
      %p79 = por %p77, %p78
      %p80 = scmp.ne.s32.totalorder %s68, %s69
      %p81 = scmp.eq.s32.totalorder %s17, 1
      %p82 = por %p80, %p81
      %p84 = scmp.ne.s32.totalorder %s69, %s83
      %p85 = scmp.eq.s32.totalorder %s17, 0
      %p86 = por %p84, %p85
      %s88 = sadd.s32 %s87, 1
      %p91 = scmp.eq.s32.totalorder %s11, 1
      %p92 = scmp.ne.s32.totalorder %s87, %s89
      %p93 = scmp.eq.s32.totalorder %s11, 0
      %p94 = por %p92, %p93
      %p95 = scmp.ne.s32.totalorder %s87, %s89
      %p96 = scmp.eq.s32.totalorder %s16, 1
      %p97 = por %p95, %p96
      %p98 = scmp.ne.s32.totalorder %s89, %s90
      %p99 = scmp.eq.s32.totalorder %s16, 0
      %p100 = por %p98, %p99
      %p101 = scmp.ne.s32.totalorder %s89, %s90
      %p102 = scmp.eq.s32.totalorder %s17, 1
      %p103 = por %p101, %p102
      %p105 = scmp.ne.s32.totalorder %s90, %s104
      %p106 = scmp.eq.s32.totalorder %s17, 0
      %p107 = por %p105, %p106
      %s109 = sadd.s32 %s108, 1
      %p112 = scmp.eq.s32.totalorder %s11, 1
      %p113 = scmp.ne.s32.totalorder %s108, %s110
      %p114 = scmp.eq.s32.totalorder %s11, 0
      %p115 = por %p113, %p114
      %p116 = scmp.ne.s32.totalorder %s108, %s110
      %p117 = scmp.eq.s32.totalorder %s16, 1
      %p118 = por %p116, %p117
      %p119 = scmp.ne.s32.totalorder %s110, %s111
      %p120 = scmp.eq.s32.totalorder %s16, 0
      %p121 = por %p119, %p120
      %p122 = scmp.ne.s32.totalorder %s110, %s111
      %p123 = scmp.eq.s32.totalorder %s17, 1
      %p124 = por %p122, %p123
      %p126 = scmp.ne.s32.totalorder %s111, %s125
      %p127 = scmp.eq.s32.totalorder %s17, 0
      %p128 = por %p126, %p127
      %s129 = ssub.s32 %s11, %s18
      %p130 = scmp.eq.s32.totalorder %s129, 0
      %s132 = sadd.s32 %s131, 1
      %s133 = scalar_select %p130, %s131, %s132
      %p136 = pneg %p130
      %p137 = scmp.eq.s32.totalorder %s11, 1
      %p138 = por %p136, %p137
      %p139 = scmp.ne.s32.totalorder %s131, %s134
      %p140 = scmp.eq.s32.totalorder %s11, 0
      %p141 = por %p139, %p140
      %p142 = scmp.ne.s32.totalorder %s131, %s134
      %p143 = scmp.eq.s32.totalorder %s16, 1
      %p144 = por %p142, %p143
      %p145 = scmp.ne.s32.totalorder %s134, %s135
      %p146 = scmp.eq.s32.totalorder %s16, 0
      %p147 = por %p145, %p146
      %p148 = scmp.ne.s32.totalorder %s134, %s135
      %p149 = scmp.eq.s32.totalorder %s17, 1
      %p150 = por %p148, %p149
      %p152 = scmp.ne.s32.totalorder %s135, %s151
      %p153 = scmp.eq.s32.totalorder %s17, 0
      %p154 = por %p152, %p153
      %p155 = scmp.le.s32.totalorder 1, %s11
      %p156 = scmp.lt.s32.totalorder %s11, 3
      %p157 = pnand %p155, %p156
      %p158 = pneg %p157
      // Predicated region
      $region9: #{small_classifier_forward.1} parent=5 // pred_check
        _
      $region10: #{small_classifier_forward.1} parent=5 // pred_check_branch
        %160 = sbr.rel (%p157) target = $region12
      $region11: #{small_classifier_forward.1} parent=5 // pred_region
        %s161 = ssub.s32 %s11, 1
        // Predicated region
        $region13: #{small_classifier_forward.1} parent=11 // pred_check
          %p162 = pneg %p58
        $region14: #{small_classifier_forward.1} parent=11 // pred_check_branch
          %164 = sbr.rel (%p162) target = $region16
        $region15: #{small_classifier_forward.1} parent=11 // pred_region
          _
        $region16: #{small_classifier_forward.1} parent=11 // pred_fallthru
          _
        // Predicated region
        $region17: #{small_classifier_forward.1} parent=11 // pred_check
          %p165 = pneg %p79
        $region18: #{small_classifier_forward.1} parent=11 // pred_check_branch
          %167 = sbr.rel (%p165) target = $region20
        $region19: #{small_classifier_forward.1} parent=11 // pred_region
          _
        $region20: #{small_classifier_forward.1} parent=11 // pred_fallthru
          _
        // Predicated region
        $region21: #{small_classifier_forward.1} parent=11 // pred_check
          %p168 = pneg %p100
        $region22: #{small_classifier_forward.1} parent=11 // pred_check_branch
          %170 = sbr.rel (%p168) target = $region24
        $region23: #{small_classifier_forward.1} parent=11 // pred_region
          _
        $region24: #{small_classifier_forward.1} parent=11 // pred_fallthru
          _
        // Predicated region
        $region25: #{small_classifier_forward.1} parent=11 // pred_check
          %p171 = pneg %p121
        $region26: #{small_classifier_forward.1} parent=11 // pred_check_branch
          %173 = sbr.rel (%p171) target = $region28
        $region27: #{small_classifier_forward.1} parent=11 // pred_region
          _
        $region28: #{small_classifier_forward.1} parent=11 // pred_fallthru
          _
      $region12: #{small_classifier_forward.1} parent=5 // pred_fallthru
        _
      %p174 = scmp.lt.s32.totalorder %s11, 2
      // Predicated region
      $region29: #{small_classifier_forward.1} parent=5 // pred_check
        %p175 = pneg %p174
      $region30: #{small_classifier_forward.1} parent=5 // pred_check_branch
        %177 = sbr.rel (%p175) target = $region32
      $region31: #{small_classifier_forward.1} parent=5 // pred_region
        // Predicated region
        $region33: #{small_classifier_forward.1} parent=31 // pred_check
          %p178 = pneg %p31
        $region34: #{small_classifier_forward.1} parent=31 // pred_check_branch
          %180 = sbr.rel (%p178) target = $region36
        $region35: #{small_classifier_forward.1} parent=31 // pred_region
          %s181 = smul.u32 2, %s11
          %s182 = ssub.s32 3, %s181
          %p183 = scmp.lt.s32.totalorder %s182, 2
          %s184 = scalar_select %p183, %s182, 2
          %s185 = smul.u32 64, %s184
          %s186 = smul.u32 %s185, 8
          %p187 = scmp.lt.s32.totalorder %s181, 2
          %s188 = scalar_select %p187, %s181, 2
          %s189 = smul.addr %s188, 8
          %s190 = smul.addr %s189, 4
          %s191 = scalar_lea.vmem %s0, %s190
          %s192 = smul.u32 2, %s11
          %s193 = ssub.s32 3, %s192
          %p194 = scmp.lt.s32.totalorder %s193, 2
          %s195 = scalar_select %p194, %s193, 2
          %s196 = smul.u32 64, %s195
          %s197 = smul.u32 %s196, 8
        $region36: #{small_classifier_forward.1} parent=31 // pred_fallthru
          _
      $region32: #{small_classifier_forward.1} parent=5 // pred_fallthru
        _
      %p198 = scmp.le.s32.totalorder 1, %s11
      %p199 = scmp.lt.s32.totalorder %s11, 3
      %p200 = pnand %p198, %p199
      %p201 = pneg %p200
      // Predicated region
      $region37: #{small_classifier_forward.1} parent=5 // pred_check
        _
      $region38: #{small_classifier_forward.1} parent=5 // pred_check_branch
        %203 = sbr.rel (%p200) target = $region40
      $region39: #{small_classifier_forward.1} parent=5 // pred_region
        %s204 = ssub.s32 %s11, 1
        %s205 = smul.u32 2, %s16
        %s206 = ssub.s32 3, %s205
        %p207 = scmp.lt.s32.totalorder %s206, 2
        %s208 = scalar_select %p207, %s206, 2
        %s209 = smul.u32 64, %s208
        %s210 = smul.u32 %s209, 8
        %p211 = scmp.lt.s32.totalorder %s205, 2
        %s212 = scalar_select %p211, %s205, 2
        %s213 = smul.addr %s212, 8
        %s214 = smul.addr %s213, 4
        %s215 = scalar_lea.vmem %s0, %s214
        %p216 = pneg %p37
        %p217 = pneg %p34
        %p218 = pneg %p58
        %p219 = pneg %p55
        %p220 = pneg %p79
        %p221 = pneg %p76
        %p222 = pneg %p100
        %p223 = pneg %p97
        %p224 = pneg %p121
        %p225 = pneg %p118
        %p226 = pneg %p147
        %p227 = pneg %p144
        %s228 = sand.u32 %s134, 1
        %s229 = sand.u32 %s134, 1
        %s230 = smul.addr %s229, 16
        %s231 = scalar_lea.vmem [#allocation2], %s230
        %s232 = smul.u32 2, %s16
        %s233 = ssub.s32 3, %s232
        %p234 = scmp.lt.s32.totalorder %s233, 2
        %s235 = scalar_select %p234, %s233, 2
        %s236 = smul.u32 64, %s235
        %s237 = smul.u32 %s236, 8
        %p238 = scmp.lt.s32.totalorder %s232, 2
        %s239 = scalar_select %p238, %s232, 2
        %s240 = smul.addr %s239, 8
        %s241 = smul.addr %s240, 4
        %s242 = scalar_lea.vmem %s0, %s241
        %s243 = smul.u32 2, %s16
        %s244 = ssub.s32 3, %s243
        %p245 = scmp.lt.s32.totalorder %s244, 2
        %s246 = scalar_select %p245, %s244, 2
        %s247 = smul.u32 64, %s246
        %s248 = smul.u32 %s247, 8
        %s249 = smul.u32 2, %s16
        %s250 = ssub.s32 3, %s249
        %p251 = scmp.lt.s32.totalorder %s250, 2
        %s252 = scalar_select %p251, %s250, 2
        %s253 = smul.u32 128, %s252
        %v255 = vld [vmem:[%s242] sm:$0xff]
        %v256 = vld [vmem:[%s242 + $0x8] sm:$0xff]
        %v257 = vld [vmem:[%s242 + $0x10] sm:$0xff]
        %v258 = vld [vmem:[%s242 + $0x18] sm:$0xff]
        %v259 = vld [vmem:[%s242 + $0x20] sm:$0xff]
        %v260 = vld [vmem:[%s242 + $0x28] sm:$0xff]
        %v261 = vld [vmem:[%s242 + $0x30] sm:$0xff]
        %v262 = vld [vmem:[%s242 + $0x38] sm:$0xff]
        %v263 = vld [vmem:[%s1] sm:$0xf]
        %v264 = vld [vmem:[%s1 + $0x4] sm:$0xf]
        %v265 = vld [vmem:[%s1 + $0x8] sm:$0xf]
        %v266 = vld [vmem:[%s1 + $0xc] sm:$0xf]
        %v267 = vld [vmem:[%s1 + $0x10] sm:$0xf]
        %v268 = vld [vmem:[%s1 + $0x14] sm:$0xf]
        %v269 = vld [vmem:[%s1 + $0x18] sm:$0xf]
        %v270 = vld [vmem:[%s1 + $0x1c] sm:$0xf]
        %v271 = vld [vmem:[%s1 + $0x20] sm:$0xf]
        %v272 = vld [vmem:[%s1 + $0x24] sm:$0xf]
        %v273 = vld [vmem:[%s1 + $0x28] sm:$0xf]
        %v274 = vld [vmem:[%s1 + $0x2c] sm:$0xf]
        %v275 = vld [vmem:[%s1 + $0x30] sm:$0xf]
        %v276 = vld [vmem:[%s1 + $0x34] sm:$0xf]
        %v277 = vld [vmem:[%s1 + $0x38] sm:$0xf]
        %v278 = vld [vmem:[%s1 + $0x3c] sm:$0xf]
        %v279 = vld [vmem:[%s1 + $0x40] sm:$0xf]
        %v280 = vld [vmem:[%s1 + $0x44] sm:$0xf]
        %v281 = vld [vmem:[%s1 + $0x48] sm:$0xf]
        %v282 = vld [vmem:[%s1 + $0x4c] sm:$0xf]
        %v283 = vld [vmem:[%s1 + $0x50] sm:$0xf]
        %v284 = vld [vmem:[%s1 + $0x54] sm:$0xf]
        %v285 = vld [vmem:[%s1 + $0x58] sm:$0xf]
        %v286 = vld [vmem:[%s1 + $0x5c] sm:$0xf]
        %v287 = vld [vmem:[%s1 + $0x60] sm:$0xf]
        %v288 = vld [vmem:[%s1 + $0x64] sm:$0xf]
        %v289 = vld [vmem:[%s1 + $0x68] sm:$0xf]
        %v290 = vld [vmem:[%s1 + $0x6c] sm:$0xf]
        %v291 = vld [vmem:[%s1 + $0x70] sm:$0xf]
        %v292 = vld [vmem:[%s1 + $0x74] sm:$0xf]
        %v293 = vld [vmem:[%s1 + $0x78] sm:$0xf]
        %v294 = vld [vmem:[%s1 + $0x7c] sm:$0xf]
        %v295 = vld [vmem:[%s1 + $0x80] sm:$0xf]
        %v296 = vld [vmem:[%s1 + $0x84] sm:$0xf]
        %v297 = vld [vmem:[%s1 + $0x88] sm:$0xf]
        %v298 = vld [vmem:[%s1 + $0x8c] sm:$0xf]
        %v299 = vld [vmem:[%s1 + $0x90] sm:$0xf]
        %v300 = vld [vmem:[%s1 + $0x94] sm:$0xf]
        %v301 = vld [vmem:[%s1 + $0x98] sm:$0xf]
        %v302 = vld [vmem:[%s1 + $0x9c] sm:$0xf]
        %v303 = vld [vmem:[%s1 + $0xa0] sm:$0xf]
        %v304 = vld [vmem:[%s1 + $0xa4] sm:$0xf]
        %v305 = vld [vmem:[%s1 + $0xa8] sm:$0xf]
        %v306 = vld [vmem:[%s1 + $0xac] sm:$0xf]
        %v307 = vld [vmem:[%s1 + $0xb0] sm:$0xf]
        %v308 = vld [vmem:[%s1 + $0xb4] sm:$0xf]
        %v309 = vld [vmem:[%s1 + $0xb8] sm:$0xf]
        %v310 = vld [vmem:[%s1 + $0xbc] sm:$0xf]
        %v311 = vld [vmem:[%s1 + $0xc0] sm:$0xf]
        %v312 = vld [vmem:[%s1 + $0xc4] sm:$0xf]
        %v313 = vld [vmem:[%s1 + $0xc8] sm:$0xf]
        %v314 = vld [vmem:[%s1 + $0xcc] sm:$0xf]
        %v315 = vld [vmem:[%s1 + $0xd0] sm:$0xf]
        %v316 = vld [vmem:[%s1 + $0xd4] sm:$0xf]
        %v317 = vld [vmem:[%s1 + $0xd8] sm:$0xf]
        %v318 = vld [vmem:[%s1 + $0xdc] sm:$0xf]
        %v319 = vld [vmem:[%s1 + $0xe0] sm:$0xf]
        %v320 = vld [vmem:[%s1 + $0xe4] sm:$0xf]
        %v321 = vld [vmem:[%s1 + $0xe8] sm:$0xf]
        %v322 = vld [vmem:[%s1 + $0xec] sm:$0xf]
        %v323 = vld [vmem:[%s1 + $0xf0] sm:$0xf]
        %v324 = vld [vmem:[%s1 + $0xf4] sm:$0xf]
        %v325 = vld [vmem:[%s1 + $0xf8] sm:$0xf]
        %v326 = vld [vmem:[%s1 + $0xfc] sm:$0xf]
        %v327 = vld [vmem:[%s1 + $0x100] sm:$0xf]
        %v328 = vld [vmem:[%s1 + $0x104] sm:$0xf]
        %v329 = vld [vmem:[%s1 + $0x108] sm:$0xf]
        %v330 = vld [vmem:[%s1 + $0x10c] sm:$0xf]
        %v331 = vld [vmem:[%s1 + $0x110] sm:$0xf]
        %v332 = vld [vmem:[%s1 + $0x114] sm:$0xf]
        %v333 = vld [vmem:[%s1 + $0x118] sm:$0xf]
        %v334 = vld [vmem:[%s1 + $0x11c] sm:$0xf]
        %v335 = vld [vmem:[%s1 + $0x120] sm:$0xf]
        %v336 = vld [vmem:[%s1 + $0x124] sm:$0xf]
        %v337 = vld [vmem:[%s1 + $0x128] sm:$0xf]
        %v338 = vld [vmem:[%s1 + $0x12c] sm:$0xf]
        %v339 = vld [vmem:[%s1 + $0x130] sm:$0xf]
        %v340 = vld [vmem:[%s1 + $0x134] sm:$0xf]
        %v341 = vld [vmem:[%s1 + $0x138] sm:$0xf]
        %v342 = vld [vmem:[%s1 + $0x13c] sm:$0xf]
        %v343 = vld [vmem:[%s1 + $0x140] sm:$0xf]
        %v344 = vld [vmem:[%s1 + $0x144] sm:$0xf]
        %v345 = vld [vmem:[%s1 + $0x148] sm:$0xf]
        %v346 = vld [vmem:[%s1 + $0x14c] sm:$0xf]
        %v347 = vld [vmem:[%s1 + $0x150] sm:$0xf]
        %v348 = vld [vmem:[%s1 + $0x154] sm:$0xf]
        %v349 = vld [vmem:[%s1 + $0x158] sm:$0xf]
        %v350 = vld [vmem:[%s1 + $0x15c] sm:$0xf]
        %v351 = vld [vmem:[%s1 + $0x160] sm:$0xf]
        %v352 = vld [vmem:[%s1 + $0x164] sm:$0xf]
        %v353 = vld [vmem:[%s1 + $0x168] sm:$0xf]
        %v354 = vld [vmem:[%s1 + $0x16c] sm:$0xf]
        %v355 = vld [vmem:[%s1 + $0x170] sm:$0xf]
        %v356 = vld [vmem:[%s1 + $0x174] sm:$0xf]
        %v357 = vld [vmem:[%s1 + $0x178] sm:$0xf]
        %v358 = vld [vmem:[%s1 + $0x17c] sm:$0xf]
        %v359 = vld [vmem:[%s1 + $0x180] sm:$0xf]
        %v360 = vld [vmem:[%s1 + $0x184] sm:$0xf]
        %v361 = vld [vmem:[%s1 + $0x188] sm:$0xf]
        %v362 = vld [vmem:[%s1 + $0x18c] sm:$0xf]
        %v363 = vld [vmem:[%s1 + $0x190] sm:$0xf]
        %v364 = vld [vmem:[%s1 + $0x194] sm:$0xf]
        %v365 = vld [vmem:[%s1 + $0x198] sm:$0xf]
        %v366 = vld [vmem:[%s1 + $0x19c] sm:$0xf]
        %v367 = vld [vmem:[%s1 + $0x1a0] sm:$0xf]
        %v368 = vld [vmem:[%s1 + $0x1a4] sm:$0xf]
        %v369 = vld [vmem:[%s1 + $0x1a8] sm:$0xf]
        %v370 = vld [vmem:[%s1 + $0x1ac] sm:$0xf]
        %v371 = vld [vmem:[%s1 + $0x1b0] sm:$0xf]
        %v372 = vld [vmem:[%s1 + $0x1b4] sm:$0xf]
        %v373 = vld [vmem:[%s1 + $0x1b8] sm:$0xf]
        %v374 = vld [vmem:[%s1 + $0x1bc] sm:$0xf]
        %v375 = vld [vmem:[%s1 + $0x1c0] sm:$0xf]
        %v376 = vld [vmem:[%s1 + $0x1c4] sm:$0xf]
        %v377 = vld [vmem:[%s1 + $0x1c8] sm:$0xf]
        %v378 = vld [vmem:[%s1 + $0x1cc] sm:$0xf]
        %v379 = vld [vmem:[%s1 + $0x1d0] sm:$0xf]
        %v380 = vld [vmem:[%s1 + $0x1d4] sm:$0xf]
        %v381 = vld [vmem:[%s1 + $0x1d8] sm:$0xf]
        %v382 = vld [vmem:[%s1 + $0x1dc] sm:$0xf]
        %v383 = vld [vmem:[%s1 + $0x1e0] sm:$0xf]
        %v384 = vld [vmem:[%s1 + $0x1e4] sm:$0xf]
        %v385 = vld [vmem:[%s1 + $0x1e8] sm:$0xf]
        %v386 = vld [vmem:[%s1 + $0x1ec] sm:$0xf]
        %v387 = vld [vmem:[%s1 + $0x1f0] sm:$0xf]
        %v388 = vld [vmem:[%s1 + $0x1f4] sm:$0xf]
        %v389 = vld [vmem:[%s1 + $0x1f8] sm:$0xf]
        %v390 = vld [vmem:[%s1 + $0x1fc] sm:$0xf]
        %v391 = vld [vmem:[%s2] sm:$0x1]
        %v393 = vlaneseq
        %v394 = vshrl.u32 %v393, 7
        %v395 = vsub.s32 0, %v394
        %v396 = vrot.slane %v391, %v395
        %v406 = vunpack.c.l.b16 %v255
        %v407 = vunpack.c.h.b16 %v255
        %v408 = vunpack.c.l.b16 %v256
        %v409 = vunpack.c.h.b16 %v256
        %v410 = vunpack.c.l.b16 %v257
        %v411 = vunpack.c.h.b16 %v257
        %v412 = vunpack.c.l.b16 %v258
        %v413 = vunpack.c.h.b16 %v258
        %v414 = vunpack.c.l.b16 %v259
        %v415 = vunpack.c.h.b16 %v259
        %v416 = vunpack.c.l.b16 %v260
        %v417 = vunpack.c.h.b16 %v260
        %v418 = vunpack.c.l.b16 %v261
        %v419 = vunpack.c.h.b16 %v261
        %v420 = vunpack.c.l.b16 %v262
        %v421 = vunpack.c.h.b16 %v262
        %v422 = vpack.c.b16 %v414, %v406
        %v423 = vpack.c.b16 %v415, %v407
        %v424 = vpack.c.b16 %v416, %v408
        %v425 = vpack.c.b16 %v417, %v409
        %v426 = vpack.c.b16 %v418, %v410
        %v427 = vpack.c.b16 %v419, %v411
        %v428 = vpack.c.b16 %v420, %v412
        %v429 = vpack.c.b16 %v421, %v413
        %v566 = vunpack.c.l.b16 %v263
        %v567 = vunpack.c.l.b16 %v264
        %v568 = vunpack.c.l.b16 %v265
        %v569 = vunpack.c.l.b16 %v266
        %v570 = vunpack.c.l.b16 %v267
        %v571 = vunpack.c.l.b16 %v268
        %v572 = vunpack.c.l.b16 %v269
        %v573 = vunpack.c.l.b16 %v270
        %v574 = vunpack.c.l.b16 %v271
        %v575 = vunpack.c.l.b16 %v272
        %v576 = vunpack.c.l.b16 %v273
        %v577 = vunpack.c.l.b16 %v274
        %v578 = vunpack.c.l.b16 %v275
        %v579 = vunpack.c.l.b16 %v276
        %v580 = vunpack.c.l.b16 %v277
        %v581 = vunpack.c.l.b16 %v278
        %v582 = vunpack.c.l.b16 %v279
        %v583 = vunpack.c.l.b16 %v280
        %v584 = vunpack.c.l.b16 %v281
        %v585 = vunpack.c.l.b16 %v282
        %v586 = vunpack.c.l.b16 %v283
        %v587 = vunpack.c.l.b16 %v284
        %v588 = vunpack.c.l.b16 %v285
        %v589 = vunpack.c.l.b16 %v286
        %v590 = vunpack.c.l.b16 %v287
        %v591 = vunpack.c.l.b16 %v288
        %v592 = vunpack.c.l.b16 %v289
        %v593 = vunpack.c.l.b16 %v290
        %v594 = vunpack.c.l.b16 %v291
        %v595 = vunpack.c.l.b16 %v292
        %v596 = vunpack.c.l.b16 %v293
        %v597 = vunpack.c.l.b16 %v294
        %v598 = vunpack.c.l.b16 %v295
        %v599 = vunpack.c.l.b16 %v296
        %v600 = vunpack.c.l.b16 %v297
        %v601 = vunpack.c.l.b16 %v298
        %v602 = vunpack.c.l.b16 %v299
        %v603 = vunpack.c.l.b16 %v300
        %v604 = vunpack.c.l.b16 %v301
        %v605 = vunpack.c.l.b16 %v302
        %v606 = vunpack.c.l.b16 %v303
        %v607 = vunpack.c.l.b16 %v304
        %v608 = vunpack.c.l.b16 %v305
        %v609 = vunpack.c.l.b16 %v306
        %v610 = vunpack.c.l.b16 %v307
        %v611 = vunpack.c.l.b16 %v308
        %v612 = vunpack.c.l.b16 %v309
        %v613 = vunpack.c.l.b16 %v310
        %v614 = vunpack.c.l.b16 %v311
        %v615 = vunpack.c.l.b16 %v312
        %v616 = vunpack.c.l.b16 %v313
        %v617 = vunpack.c.l.b16 %v314
        %v618 = vunpack.c.l.b16 %v315
        %v619 = vunpack.c.l.b16 %v316
        %v620 = vunpack.c.l.b16 %v317
        %v621 = vunpack.c.l.b16 %v318
        %v622 = vunpack.c.l.b16 %v319
        %v623 = vunpack.c.l.b16 %v320
        %v624 = vunpack.c.l.b16 %v321
        %v625 = vunpack.c.l.b16 %v322
        %v626 = vunpack.c.l.b16 %v323
        %v627 = vunpack.c.l.b16 %v324
        %v628 = vunpack.c.l.b16 %v325
        %v629 = vunpack.c.l.b16 %v326
        %v630 = vunpack.c.l.b16 %v327
        %v631 = vunpack.c.l.b16 %v328
        %v632 = vunpack.c.l.b16 %v329
        %v633 = vunpack.c.l.b16 %v330
        %v634 = vunpack.c.l.b16 %v331
        %v635 = vunpack.c.l.b16 %v332
        %v636 = vunpack.c.l.b16 %v333
        %v637 = vunpack.c.l.b16 %v334
        %v638 = vunpack.c.l.b16 %v335
        %v639 = vunpack.c.l.b16 %v336
        %v640 = vunpack.c.l.b16 %v337
        %v641 = vunpack.c.l.b16 %v338
        %v642 = vunpack.c.l.b16 %v339
        %v643 = vunpack.c.l.b16 %v340
        %v644 = vunpack.c.l.b16 %v341
        %v645 = vunpack.c.l.b16 %v342
        %v646 = vunpack.c.l.b16 %v343
        %v647 = vunpack.c.l.b16 %v344
        %v648 = vunpack.c.l.b16 %v345
        %v649 = vunpack.c.l.b16 %v346
        %v650 = vunpack.c.l.b16 %v347
        %v651 = vunpack.c.l.b16 %v348
        %v652 = vunpack.c.l.b16 %v349
        %v653 = vunpack.c.l.b16 %v350
        %v654 = vunpack.c.l.b16 %v351
        %v655 = vunpack.c.l.b16 %v352
        %v656 = vunpack.c.l.b16 %v353
        %v657 = vunpack.c.l.b16 %v354
        %v658 = vunpack.c.l.b16 %v355
        %v659 = vunpack.c.l.b16 %v356
        %v660 = vunpack.c.l.b16 %v357
        %v661 = vunpack.c.l.b16 %v358
        %v662 = vunpack.c.l.b16 %v359
        %v663 = vunpack.c.l.b16 %v360
        %v664 = vunpack.c.l.b16 %v361
        %v665 = vunpack.c.l.b16 %v362
        %v666 = vunpack.c.l.b16 %v363
        %v667 = vunpack.c.l.b16 %v364
        %v668 = vunpack.c.l.b16 %v365
        %v669 = vunpack.c.l.b16 %v366
        %v670 = vunpack.c.l.b16 %v367
        %v671 = vunpack.c.l.b16 %v368
        %v672 = vunpack.c.l.b16 %v369
        %v673 = vunpack.c.l.b16 %v370
        %v674 = vunpack.c.l.b16 %v371
        %v675 = vunpack.c.l.b16 %v372
        %v676 = vunpack.c.l.b16 %v373
        %v677 = vunpack.c.l.b16 %v374
        %v678 = vunpack.c.l.b16 %v375
        %v679 = vunpack.c.l.b16 %v376
        %v680 = vunpack.c.l.b16 %v377
        %v681 = vunpack.c.l.b16 %v378
        %v682 = vunpack.c.l.b16 %v379
        %v683 = vunpack.c.l.b16 %v380
        %v684 = vunpack.c.l.b16 %v381
        %v685 = vunpack.c.l.b16 %v382
        %v686 = vunpack.c.l.b16 %v383
        %v687 = vunpack.c.l.b16 %v384
        %v688 = vunpack.c.l.b16 %v385
        %v689 = vunpack.c.l.b16 %v386
        %v690 = vunpack.c.l.b16 %v387
        %v691 = vunpack.c.l.b16 %v388
        %v692 = vunpack.c.l.b16 %v389
        %v693 = vunpack.c.l.b16 %v390
        %v694 = vpack.c.b16 %v567, %v566
        %v695 = vpack.c.b16 %v569, %v568
        %v696 = vpack.c.b16 %v571, %v570
        %v697 = vpack.c.b16 %v573, %v572
        %v698 = vpack.c.b16 %v575, %v574
        %v699 = vpack.c.b16 %v577, %v576
        %v700 = vpack.c.b16 %v579, %v578
        %v701 = vpack.c.b16 %v581, %v580
        %v702 = vpack.c.b16 %v583, %v582
        %v703 = vpack.c.b16 %v585, %v584
        %v704 = vpack.c.b16 %v587, %v586
        %v705 = vpack.c.b16 %v589, %v588
        %v706 = vpack.c.b16 %v591, %v590
        %v707 = vpack.c.b16 %v593, %v592
        %v708 = vpack.c.b16 %v595, %v594
        %v709 = vpack.c.b16 %v597, %v596
        %v710 = vpack.c.b16 %v599, %v598
        %v711 = vpack.c.b16 %v601, %v600
        %v712 = vpack.c.b16 %v603, %v602
        %v713 = vpack.c.b16 %v605, %v604
        %v714 = vpack.c.b16 %v607, %v606
        %v715 = vpack.c.b16 %v609, %v608
        %v716 = vpack.c.b16 %v611, %v610
        %v717 = vpack.c.b16 %v613, %v612
        %v718 = vpack.c.b16 %v615, %v614
        %v719 = vpack.c.b16 %v617, %v616
        %v720 = vpack.c.b16 %v619, %v618
        %v721 = vpack.c.b16 %v621, %v620
        %v722 = vpack.c.b16 %v623, %v622
        %v723 = vpack.c.b16 %v625, %v624
        %v724 = vpack.c.b16 %v627, %v626
        %v725 = vpack.c.b16 %v629, %v628
        %v726 = vpack.c.b16 %v631, %v630
        %v727 = vpack.c.b16 %v633, %v632
        %v728 = vpack.c.b16 %v635, %v634
        %v729 = vpack.c.b16 %v637, %v636
        %v730 = vpack.c.b16 %v639, %v638
        %v731 = vpack.c.b16 %v641, %v640
        %v732 = vpack.c.b16 %v643, %v642
        %v733 = vpack.c.b16 %v645, %v644
        %v734 = vpack.c.b16 %v647, %v646
        %v735 = vpack.c.b16 %v649, %v648
        %v736 = vpack.c.b16 %v651, %v650
        %v737 = vpack.c.b16 %v653, %v652
        %v738 = vpack.c.b16 %v655, %v654
        %v739 = vpack.c.b16 %v657, %v656
        %v740 = vpack.c.b16 %v659, %v658
        %v741 = vpack.c.b16 %v661, %v660
        %v742 = vpack.c.b16 %v663, %v662
        %v743 = vpack.c.b16 %v665, %v664
        %v744 = vpack.c.b16 %v667, %v666
        %v745 = vpack.c.b16 %v669, %v668
        %v746 = vpack.c.b16 %v671, %v670
        %v747 = vpack.c.b16 %v673, %v672
        %v748 = vpack.c.b16 %v675, %v674
        %v749 = vpack.c.b16 %v677, %v676
        %v750 = vpack.c.b16 %v679, %v678
        %v751 = vpack.c.b16 %v681, %v680
        %v752 = vpack.c.b16 %v683, %v682
        %v753 = vpack.c.b16 %v685, %v684
        %v754 = vpack.c.b16 %v687, %v686
        %v755 = vpack.c.b16 %v689, %v688
        %v756 = vpack.c.b16 %v691, %v690
        %v757 = vpack.c.b16 %v693, %v692
        %822 = vmatprep.subr.bf16.mxu0 0
        %823 = vmatpush1.bf16.msra.mxu0 %v694
        %824 = vmatprep.subr.bf16.mxu0 0
        %825 = vmatpush1.bf16.msra.mxu0 %v695
        %826 = vmatprep.subr.bf16.mxu0 0
        %827 = vmatpush1.bf16.msra.mxu0 %v696
        %828 = vmatprep.subr.bf16.mxu0 0
        %829 = vmatpush1.bf16.msra.mxu0 %v697
        %830 = vmatprep.subr.bf16.mxu0 0
        %831 = vmatpush1.bf16.msra.mxu0 %v698
        %832 = vmatprep.subr.bf16.mxu0 0
        %833 = vmatpush1.bf16.msra.mxu0 %v699
        %834 = vmatprep.subr.bf16.mxu0 0
        %835 = vmatpush1.bf16.msra.mxu0 %v700
        %836 = vmatprep.subr.bf16.mxu0 0
        %837 = vmatpush1.bf16.msra.mxu0 %v701
        %838 = vmatprep.subr.bf16.mxu0 0
        %839 = vmatpush1.bf16.msra.mxu0 %v702
        %840 = vmatprep.subr.bf16.mxu0 0
        %841 = vmatpush1.bf16.msra.mxu0 %v703
        %842 = vmatprep.subr.bf16.mxu0 0
        %843 = vmatpush1.bf16.msra.mxu0 %v704
        %844 = vmatprep.subr.bf16.mxu0 0
        %845 = vmatpush1.bf16.msra.mxu0 %v705
        %846 = vmatprep.subr.bf16.mxu0 0
        %847 = vmatpush1.bf16.msra.mxu0 %v706
        %848 = vmatprep.subr.bf16.mxu0 0
        %849 = vmatpush1.bf16.msra.mxu0 %v707
        %850 = vmatprep.subr.bf16.mxu0 0
        %851 = vmatpush1.bf16.msra.mxu0 %v708
        %852 = vmatprep.subr.bf16.mxu0 0
        %853 = vmatpush1.bf16.msra.mxu0 %v709
        %854 = vmatprep.mubr.bf16.mxu0 %v423
        %855 = vmatmul.mubr.bf16.gmra.mrb[0].mxu0 %v422
        %v856 = vpop.f32.mrb[0].mxu0
        %v857 = vadd.f32 %v396, %v856
        %v858 = vpop.f32.mrb[0].mxu0
        %v859 = vpop.f32.mrb[0].mxu0
        %v860 = vadd.f32 %v396, %v859
        %v861 = vpop.f32.mrb[0].mxu0
        %862 = vdwg.mxu0
        %863 = vmatprep.subr.bf16.mxu0 0
        %864 = vmatpush1.bf16.msra.mxu0 %v710
        %865 = vmatprep.subr.bf16.mxu0 0
        %866 = vmatpush1.bf16.msra.mxu0 %v711
        %867 = vmatprep.subr.bf16.mxu0 0
        %868 = vmatpush1.bf16.msra.mxu0 %v712
        %869 = vmatprep.subr.bf16.mxu0 0
        %870 = vmatpush1.bf16.msra.mxu0 %v713
        %871 = vmatprep.subr.bf16.mxu0 0
        %872 = vmatpush1.bf16.msra.mxu0 %v714
        %873 = vmatprep.subr.bf16.mxu0 0
        %874 = vmatpush1.bf16.msra.mxu0 %v715
        %875 = vmatprep.subr.bf16.mxu0 0
        %876 = vmatpush1.bf16.msra.mxu0 %v716
        %877 = vmatprep.subr.bf16.mxu0 0
        %878 = vmatpush1.bf16.msra.mxu0 %v717
        %879 = vmatprep.subr.bf16.mxu0 0
        %880 = vmatpush1.bf16.msra.mxu0 %v718
        %881 = vmatprep.subr.bf16.mxu0 0
        %882 = vmatpush1.bf16.msra.mxu0 %v719
        %883 = vmatprep.subr.bf16.mxu0 0
        %884 = vmatpush1.bf16.msra.mxu0 %v720
        %885 = vmatprep.subr.bf16.mxu0 0
        %886 = vmatpush1.bf16.msra.mxu0 %v721
        %887 = vmatprep.subr.bf16.mxu0 0
        %888 = vmatpush1.bf16.msra.mxu0 %v722
        %889 = vmatprep.subr.bf16.mxu0 0
        %890 = vmatpush1.bf16.msra.mxu0 %v723
        %891 = vmatprep.subr.bf16.mxu0 0
        %892 = vmatpush1.bf16.msra.mxu0 %v724
        %893 = vmatprep.subr.bf16.mxu0 0
        %894 = vmatpush1.bf16.msra.mxu0 %v725
        %895 = vmatprep.mubr.bf16.mxu0 %v425
        %896 = vmatmul.mubr.bf16.gmra.mrb[0].mxu0 %v424
        %v897 = vpop.f32.mrb[0].mxu0
        %v898 = vadd.f32 %v857, %v897
        %v899 = vpop.f32.mrb[0].mxu0
        %v900 = vpop.f32.mrb[0].mxu0
        %v901 = vadd.f32 %v860, %v900
        %v902 = vpop.f32.mrb[0].mxu0
        %903 = vdwg.mxu0
        %904 = vmatprep.subr.bf16.mxu0 0
        %905 = vmatpush1.bf16.msra.mxu0 %v726
        %906 = vmatprep.subr.bf16.mxu0 0
        %907 = vmatpush1.bf16.msra.mxu0 %v727
        %908 = vmatprep.subr.bf16.mxu0 0
        %909 = vmatpush1.bf16.msra.mxu0 %v728
        %910 = vmatprep.subr.bf16.mxu0 0
        %911 = vmatpush1.bf16.msra.mxu0 %v729
        %912 = vmatprep.subr.bf16.mxu0 0
        %913 = vmatpush1.bf16.msra.mxu0 %v730
        %914 = vmatprep.subr.bf16.mxu0 0
        %915 = vmatpush1.bf16.msra.mxu0 %v731
        %916 = vmatprep.subr.bf16.mxu0 0
        %917 = vmatpush1.bf16.msra.mxu0 %v732
        %918 = vmatprep.subr.bf16.mxu0 0
        %919 = vmatpush1.bf16.msra.mxu0 %v733
        %920 = vmatprep.subr.bf16.mxu0 0
        %921 = vmatpush1.bf16.msra.mxu0 %v734
        %922 = vmatprep.subr.bf16.mxu0 0
        %923 = vmatpush1.bf16.msra.mxu0 %v735
        %924 = vmatprep.subr.bf16.mxu0 0
        %925 = vmatpush1.bf16.msra.mxu0 %v736
        %926 = vmatprep.subr.bf16.mxu0 0
        %927 = vmatpush1.bf16.msra.mxu0 %v737
        %928 = vmatprep.subr.bf16.mxu0 0
        %929 = vmatpush1.bf16.msra.mxu0 %v738
        %930 = vmatprep.subr.bf16.mxu0 0
        %931 = vmatpush1.bf16.msra.mxu0 %v739
        %932 = vmatprep.subr.bf16.mxu0 0
        %933 = vmatpush1.bf16.msra.mxu0 %v740
        %934 = vmatprep.subr.bf16.mxu0 0
        %935 = vmatpush1.bf16.msra.mxu0 %v741
        %936 = vmatprep.mubr.bf16.mxu0 %v427
        %937 = vmatmul.mubr.bf16.gmra.mrb[0].mxu0 %v426
        %v938 = vpop.f32.mrb[0].mxu0
        %v939 = vadd.f32 %v898, %v938
        %v940 = vpop.f32.mrb[0].mxu0
        %v941 = vpop.f32.mrb[0].mxu0
        %v942 = vadd.f32 %v901, %v941
        %v943 = vpop.f32.mrb[0].mxu0
        %944 = vdwg.mxu0
        %945 = vmatprep.subr.bf16.mxu0 0
        %946 = vmatpush1.bf16.msra.mxu0 %v742
        %947 = vmatprep.subr.bf16.mxu0 0
        %948 = vmatpush1.bf16.msra.mxu0 %v743
        %949 = vmatprep.subr.bf16.mxu0 0
        %950 = vmatpush1.bf16.msra.mxu0 %v744
        %951 = vmatprep.subr.bf16.mxu0 0
        %952 = vmatpush1.bf16.msra.mxu0 %v745
        %953 = vmatprep.subr.bf16.mxu0 0
        %954 = vmatpush1.bf16.msra.mxu0 %v746
        %955 = vmatprep.subr.bf16.mxu0 0
        %956 = vmatpush1.bf16.msra.mxu0 %v747
        %957 = vmatprep.subr.bf16.mxu0 0
        %958 = vmatpush1.bf16.msra.mxu0 %v748
        %959 = vmatprep.subr.bf16.mxu0 0
        %960 = vmatpush1.bf16.msra.mxu0 %v749
        %961 = vmatprep.subr.bf16.mxu0 0
        %962 = vmatpush1.bf16.msra.mxu0 %v750
        %963 = vmatprep.subr.bf16.mxu0 0
        %964 = vmatpush1.bf16.msra.mxu0 %v751
        %965 = vmatprep.subr.bf16.mxu0 0
        %966 = vmatpush1.bf16.msra.mxu0 %v752
        %967 = vmatprep.subr.bf16.mxu0 0
        %968 = vmatpush1.bf16.msra.mxu0 %v753
        %969 = vmatprep.subr.bf16.mxu0 0
        %970 = vmatpush1.bf16.msra.mxu0 %v754
        %971 = vmatprep.subr.bf16.mxu0 0
        %972 = vmatpush1.bf16.msra.mxu0 %v755
        %973 = vmatprep.subr.bf16.mxu0 0
        %974 = vmatpush1.bf16.msra.mxu0 %v756
        %975 = vmatprep.subr.bf16.mxu0 0
        %976 = vmatpush1.bf16.msra.mxu0 %v757
        %977 = vmatprep.mubr.bf16.mxu0 %v429
        %978 = vmatmul.mubr.bf16.gmra.mrb[0].mxu0 %v428
        %v979 = vpop.f32.mrb[0].mxu0
        %v980 = vadd.f32 %v939, %v979
        %v981 = vpop.f32.mrb[0].mxu0
        %v982 = vpop.f32.mrb[0].mxu0
        %v983 = vadd.f32 %v942, %v982
        %v984 = vpop.f32.mrb[0].mxu0
        %985 = vdwg.mxu0
        %v986 = vmax.f32 %v980, 0.0
        %v987 = vmax.f32 %v983, 0.0
        %v988 = vpack.c.bf16 %v987, %v986
        %v989 = vld [vmem:[%s3] sm:$0xf]
        %v990 = vld [vmem:[%s3 + $0x4] sm:$0xf]
        %v991 = vld [vmem:[%s3 + $0x8] sm:$0xf]
        %v992 = vld [vmem:[%s3 + $0xc] sm:$0xf]
        %v993 = vld [vmem:[%s3 + $0x10] sm:$0xf]
        %v994 = vld [vmem:[%s3 + $0x14] sm:$0xf]
        %v995 = vld [vmem:[%s3 + $0x18] sm:$0xf]
        %v996 = vld [vmem:[%s3 + $0x1c] sm:$0xf]
        %v997 = vld [vmem:[%s3 + $0x20] sm:$0xf]
        %v998 = vld [vmem:[%s3 + $0x24] sm:$0xf]
        %v999 = vld [vmem:[%s3 + $0x28] sm:$0xf]
        %v1000 = vld [vmem:[%s3 + $0x2c] sm:$0xf]
        %v1001 = vld [vmem:[%s3 + $0x30] sm:$0xf]
        %v1002 = vld [vmem:[%s3 + $0x34] sm:$0xf]
        %v1003 = vld [vmem:[%s3 + $0x38] sm:$0xf]
        %v1004 = vld [vmem:[%s3 + $0x3c] sm:$0xf]
        %v1005 = vld [vmem:[%s4] sm:$0x1]
        %v1007 = vlaneseq
        %v1008 = vshrl.u32 %v1007, 7
        %v1009 = vsub.s32 0, %v1008
        %v1010 = vrot.slane %v1005, %v1009
        %v1028 = vunpack.c.l.b16 %v989
        %v1029 = vunpack.c.l.b16 %v990
        %v1030 = vunpack.c.l.b16 %v991
        %v1031 = vunpack.c.l.b16 %v992
        %v1032 = vunpack.c.l.b16 %v993
        %v1033 = vunpack.c.l.b16 %v994
        %v1034 = vunpack.c.l.b16 %v995
        %v1035 = vunpack.c.l.b16 %v996
        %v1036 = vunpack.c.l.b16 %v997
        %v1037 = vunpack.c.l.b16 %v998
        %v1038 = vunpack.c.l.b16 %v999
        %v1039 = vunpack.c.l.b16 %v1000
        %v1040 = vunpack.c.l.b16 %v1001
        %v1041 = vunpack.c.l.b16 %v1002
        %v1042 = vunpack.c.l.b16 %v1003
        %v1043 = vunpack.c.l.b16 %v1004
        %v1044 = vpack.c.b16 %v1029, %v1028
        %v1045 = vpack.c.b16 %v1031, %v1030
        %v1046 = vpack.c.b16 %v1033, %v1032
        %v1047 = vpack.c.b16 %v1035, %v1034
        %v1048 = vpack.c.b16 %v1037, %v1036
        %v1049 = vpack.c.b16 %v1039, %v1038
        %v1050 = vpack.c.b16 %v1041, %v1040
        %v1051 = vpack.c.b16 %v1043, %v1042
        %1060 = vmatprep.subr.bf16.mxu0 0
        %1061 = vmatpush1.bf16.msra.mxu0 %v1044
        %1062 = vmatprep.subr.bf16.mxu0 0
        %1063 = vmatpush1.bf16.msra.mxu0 %v1045
        %1064 = vmatprep.subr.bf16.mxu0 0
        %1065 = vmatpush1.bf16.msra.mxu0 %v1046
        %1066 = vmatprep.subr.bf16.mxu0 0
        %1067 = vmatpush1.bf16.msra.mxu0 %v1047
        %1068 = vmatprep.subr.bf16.mxu0 0
        %1069 = vmatpush1.bf16.msra.mxu0 %v1048
        %1070 = vmatprep.subr.bf16.mxu0 0
        %1071 = vmatpush1.bf16.msra.mxu0 %v1049
        %1072 = vmatprep.subr.bf16.mxu0 0
        %1073 = vmatpush1.bf16.msra.mxu0 %v1050
        %1074 = vmatprep.subr.bf16.mxu0 0
        %1075 = vmatpush1.bf16.msra.mxu0 %v1051
        %1076 = vmatprep.subr.bf16.mxu0 0
        %1077 = vmatpush1.bf16.msra.mxu0 0
        %1078 = vmatprep.subr.bf16.mxu0 0
        %1079 = vmatpush1.bf16.msra.mxu0 0
        %1080 = vmatprep.subr.bf16.mxu0 0
        %1081 = vmatpush1.bf16.msra.mxu0 0
        %1082 = vmatprep.subr.bf16.mxu0 0
        %1083 = vmatpush1.bf16.msra.mxu0 0
        %1084 = vmatprep.subr.bf16.mxu0 0
        %1085 = vmatpush1.bf16.msra.mxu0 0
        %1086 = vmatprep.subr.bf16.mxu0 0
        %1087 = vmatpush1.bf16.msra.mxu0 0
        %1088 = vmatprep.subr.bf16.mxu0 0
        %1089 = vmatpush1.bf16.msra.mxu0 0
        %1090 = vmatprep.subr.bf16.mxu0 0
        %1091 = vmatpush1.bf16.msra.mxu0 0
        %1092 = vmatprep.mubr.bf16.mxu0 0
        %1093 = vmatmul.mubr.bf16.gmra.mrb[0].mxu0 %v988
        %v1094 = vpop.f32.mrb[0].mxu0
        %v1095 = vadd.f32 %v1010, %v1094
        %v1096 = vpop.f32.mrb[0].mxu0
        %v1097 = vpop.f32.mrb[0].mxu0
        %v1098 = vadd.f32 %v1010, %v1097
        %v1099 = vpop.f32.mrb[0].mxu0
        %1100 = vdwg.mxu0
        %vm1101 = vcmask 15360
        %1102 = vst.msk [vmem:[%s231] sm:$0xff] %vm1101, %v1095
        %1103 = vst.msk [vmem:[%s231 + $0x8] sm:$0xff] %vm1101, %v1098
        %s1104 = sand.u32 %s134, 1
        %s1105 = sand.u32 %s134, 1
        %s1106 = smul.addr %s1105, 16
        %s1107 = scalar_lea.vmem [#allocation2], %s1106
        // Predicated region
        $region41: #{small_classifier_forward.1} parent=39 // pred_check
          %p1108 = pneg %p144
        $region42: #{small_classifier_forward.1} parent=39 // pred_check_branch
          %1110 = sbr.rel (%p1108) target = $region44
        $region43: #{small_classifier_forward.1} parent=39 // pred_region
          %s1111 = smul.u32 2, %s16
          %s1112 = ssub.s32 3, %s1111
          %p1113 = scmp.lt.s32.totalorder %s1112, 2
          %s1114 = scalar_select %p1113, %s1112, 2
          %s1115 = smul.u32 128, %s1114
          %p1116 = scmp.ne.s32.totalorder 0, %s1115
          %s1117 = smul.addr %s1111, 8
          %s1118 = scalar_lea.vmem %s5, %s1117
          // Predicated region
          $region45: #{small_classifier_forward.1} parent=43 // pred_check
            %p1119 = pneg %p1116
          $region46: #{small_classifier_forward.1} parent=43 // pred_check_branch
            %1121 = sbr.rel (%p1119) target = $region48
          $region47: #{small_classifier_forward.1} parent=43 // pred_region
            // Predicated region
            $region49: #{small_classifier_forward.1} parent=47 // pred_check
              _
            $region50: #{small_classifier_forward.1} parent=47 // pred_check_branch
              %1123 = sbr.rel (0) target = $region52
            $region51: #{small_classifier_forward.1} parent=47 // pred_region
              // Predicated region
              $region71: #{small_classifier_forward.1} parent=51 // pred_check
                _
              $region72: #{small_classifier_forward.1} parent=51 // pred_check_branch
                %1174 = sbr.rel (0) target = $region74
              $region73: #{small_classifier_forward.1} parent=51 // pred_region
                %s1175 = sshrl.u32 %s1114, 1
                // While loop
                $region75: #{small_classifier_forward.1} parent=73 // loop_pre_header
                  _
                $region76: #{small_classifier_forward.1} parent=73 // loop_header
                  %s1177 = sphi 0, %s1179
                  %p1178 = scmp.ge.s32.totalorder %s1177, %s1175
                  %s1182 = sphi 0, %s1191
                  %s1183 = sphi %s1107, %s1194
                  %s1184 = sphi %s1118, %s1195
                $region77: #{small_classifier_forward.1} parent=73 // loop_header_branch
                  %1181 = sbr.rel (%p1178) target = $region81
                $region78: #{small_classifier_forward.1} parent=73 // loop_body
                  %v1185 = vld [vmem:[%s1183] sm:$0xff]
                  %1186 = vst [vmem:[%s1184] sm:$0xff] %v1185
                  %v1187 = vld [vmem:[%s1183 + $0x8] sm:$0xff]
                  %1188 = vst [vmem:[%s1184 + $0x8] sm:$0xff] %v1187
                  %s1189 = sadd.s32 1, %s1182
                  %p1190 = scmp.ge.s32.totalorder %s1189, %s1175
                  %s1191 = scalar_select %p1190, 0, %s1189
                  %s1192 = smul.u32 %s1191, 16
                  %s1193 = smul.u32 %s1191, 16
                  %s1194 = scalar_lea.vmem %s1107, %s1192 [#allocation2]
                  %s1195 = scalar_lea.vmem %s1118, %s1193
                $region79: #{small_classifier_forward.1} parent=73 // loop_footer
                  %s1179 = sadd.s32 %s1177, 1
                $region80: #{small_classifier_forward.1} parent=73 // loop_footer_branch
                  %1176 = sbr.rel target = $region76
                $region81: #{small_classifier_forward.1} parent=73 // loop_exit
                  _
                %s1196 = sshrl.u32 %s1114, 1
                %s1197 = sand.u32 %s1114, 1
                %s1198 = smul.u32 %s1196, 2
                %s1199 = smul.u32 8, %s1198
                %s1200 = scalar_lea.vmem %s1107, %s1199 [#allocation2]
                %s1201 = smul.u32 8, %s1198
                %s1202 = scalar_lea.vmem %s1118, %s1201
                // While loop
                $region82: #{small_classifier_forward.1} parent=73 // loop_pre_header
                  _
                $region83: #{small_classifier_forward.1} parent=73 // loop_header
                  %s1204 = sphi 0, %s1206
                  %p1205 = scmp.ge.s32.totalorder %s1204, %s1197
                  %s1209 = sphi 0, %s1216
                  %s1210 = sphi %s1200, %s1219
                  %s1211 = sphi %s1202, %s1220
                $region84: #{small_classifier_forward.1} parent=73 // loop_header_branch
                  %1208 = sbr.rel (%p1205) target = $region88
                $region85: #{small_classifier_forward.1} parent=73 // loop_body
                  %v1212 = vld [vmem:[%s1210] sm:$0xff]
                  %1213 = vst [vmem:[%s1211] sm:$0xff] %v1212
                  %s1214 = sadd.s32 1, %s1209
                  %p1215 = scmp.ge.s32.totalorder %s1214, %s1197
                  %s1216 = scalar_select %p1215, 0, %s1214
                  %s1217 = smul.u32 %s1216, 8
                  %s1218 = smul.u32 %s1216, 8
                  %s1219 = scalar_lea.vmem %s1200, %s1217 [#allocation2]
                  %s1220 = scalar_lea.vmem %s1202, %s1218
                $region86: #{small_classifier_forward.1} parent=73 // loop_footer
                  %s1206 = sadd.s32 %s1204, 1
                $region87: #{small_classifier_forward.1} parent=73 // loop_footer_branch
                  %1203 = sbr.rel target = $region83
                $region88: #{small_classifier_forward.1} parent=73 // loop_exit
                  _
              $region74: #{small_classifier_forward.1} parent=51 // pred_fallthru
                _
              // Predicated region
              $region89: #{small_classifier_forward.1} parent=51 // pred_check
                _
              $region90: #{small_classifier_forward.1} parent=51 // pred_check_branch
                %1222 = sbr.rel target = $region92
              $region91: #{small_classifier_forward.1} parent=51 // pred_region
                _
              $region92: #{small_classifier_forward.1} parent=51 // pred_fallthru
                _
            $region52: #{small_classifier_forward.1} parent=47 // pred_fallthru
              _
            // Predicated region
            $region53: #{small_classifier_forward.1} parent=47 // pred_check
              _
            $region54: #{small_classifier_forward.1} parent=47 // pred_check_branch
              %1125 = sbr.rel target = $region56
            $region55: #{small_classifier_forward.1} parent=47 // pred_region
              %s1127 = sshrl.u32 %s1114, 1
              // While loop
              $region57: #{small_classifier_forward.1} parent=55 // loop_pre_header
                _
              $region58: #{small_classifier_forward.1} parent=55 // loop_header
                %s1129 = sphi 0, %s1131
                %p1130 = scmp.ge.s32.totalorder %s1129, %s1127
                %s1134 = sphi 0, %s1143
                %s1135 = sphi %s1107, %s1146
                %s1136 = sphi %s1118, %s1147
              $region59: #{small_classifier_forward.1} parent=55 // loop_header_branch
                %1133 = sbr.rel (%p1130) target = $region63
              $region60: #{small_classifier_forward.1} parent=55 // loop_body
                %v1137 = vld [vmem:[%s1135] sm:$0xff]
                %1138 = vst [vmem:[%s1136] sm:$0xff] %v1137
                %v1139 = vld [vmem:[%s1135 + $0x8] sm:$0xff]
                %1140 = vst [vmem:[%s1136 + $0x8] sm:$0xff] %v1139
                %s1141 = sadd.s32 1, %s1134
                %p1142 = scmp.ge.s32.totalorder %s1141, %s1127
                %s1143 = scalar_select %p1142, 0, %s1141
                %s1144 = smul.u32 %s1143, 16
                %s1145 = smul.u32 %s1143, 16
                %s1146 = scalar_lea.vmem %s1107, %s1144 [#allocation2]
                %s1147 = scalar_lea.vmem %s1118, %s1145
              $region61: #{small_classifier_forward.1} parent=55 // loop_footer
                %s1131 = sadd.s32 %s1129, 1
              $region62: #{small_classifier_forward.1} parent=55 // loop_footer_branch
                %1128 = sbr.rel target = $region58
              $region63: #{small_classifier_forward.1} parent=55 // loop_exit
                _
              %s1148 = sshrl.u32 %s1114, 1
              %s1149 = sand.u32 %s1114, 1
              %s1150 = smul.u32 %s1148, 2
              %s1151 = smul.u32 8, %s1150
              %s1152 = scalar_lea.vmem %s1107, %s1151 [#allocation2]
              %s1153 = smul.u32 8, %s1150
              %s1154 = scalar_lea.vmem %s1118, %s1153
              // While loop
              $region64: #{small_classifier_forward.1} parent=55 // loop_pre_header
                _
              $region65: #{small_classifier_forward.1} parent=55 // loop_header
                %s1156 = sphi 0, %s1158
                %p1157 = scmp.ge.s32.totalorder %s1156, %s1149
                %s1161 = sphi 0, %s1168
                %s1162 = sphi %s1152, %s1171
                %s1163 = sphi %s1154, %s1172
              $region66: #{small_classifier_forward.1} parent=55 // loop_header_branch
                %1160 = sbr.rel (%p1157) target = $region70
              $region67: #{small_classifier_forward.1} parent=55 // loop_body
                %v1164 = vld [vmem:[%s1162] sm:$0xff]
                %1165 = vst [vmem:[%s1163] sm:$0xff] %v1164
                %s1166 = sadd.s32 1, %s1161
                %p1167 = scmp.ge.s32.totalorder %s1166, %s1149
                %s1168 = scalar_select %p1167, 0, %s1166
                %s1169 = smul.u32 %s1168, 8
                %s1170 = smul.u32 %s1168, 8
                %s1171 = scalar_lea.vmem %s1152, %s1169 [#allocation2]
                %s1172 = scalar_lea.vmem %s1154, %s1170
              $region68: #{small_classifier_forward.1} parent=55 // loop_footer
                %s1158 = sadd.s32 %s1156, 1
              $region69: #{small_classifier_forward.1} parent=55 // loop_footer_branch
                %1155 = sbr.rel target = $region65
              $region70: #{small_classifier_forward.1} parent=55 // loop_exit
                _
            $region56: #{small_classifier_forward.1} parent=47 // pred_fallthru
              _
          $region48: #{small_classifier_forward.1} parent=43 // pred_fallthru
            _
          %1223 = vnop
        $region44: #{small_classifier_forward.1} parent=39 // pred_fallthru
          _
      $region40: #{small_classifier_forward.1} parent=5 // pred_fallthru
        _
      %p1224 = scmp.le.s32.totalorder 2, %s11
      // Predicated region
      $region93: #{small_classifier_forward.1} parent=5 // pred_check
        %p1225 = pneg %p1224
      $region94: #{small_classifier_forward.1} parent=5 // pred_check_branch
        %1227 = sbr.rel (%p1225) target = $region96
      $region95: #{small_classifier_forward.1} parent=5 // pred_region
        %s1228 = ssub.s32 %s11, 2
        // Predicated region
        $region97: #{small_classifier_forward.1} parent=95 // pred_check
          %p1229 = pneg %p150
        $region98: #{small_classifier_forward.1} parent=95 // pred_check_branch
          %1231 = sbr.rel (%p1229) target = $region100
        $region99: #{small_classifier_forward.1} parent=95 // pred_region
          %s1232 = sand.u32 %s135, 1
          %s1233 = sand.u32 %s135, 1
          %s1234 = smul.addr %s1233, 16
          %s1235 = scalar_lea.vmem [#allocation2], %s1234
        $region100: #{small_classifier_forward.1} parent=95 // pred_fallthru
          _
      $region96: #{small_classifier_forward.1} parent=5 // pred_fallthru
        _
    $region6: #{small_classifier_forward.1} parent=1 // loop_footer
      %s15 = sadd.s32 1, %s11
    $region7: #{small_classifier_forward.1} parent=1 // loop_footer_branch
      %10 = sbr.rel target = $region3
    $region8: #{small_classifier_forward.1} parent=1 // loop_exit
      _

</llo_original>
